<compile_context>
chip_gen: v6e
topology: v6e:2x2x1
jax: 0.10.0
libtpu: 0.0.40
codegen_flags: <defaults>
</compile_context>

<pallas_src>
import jax
import jax.numpy as jnp
from jax.experimental import pallas as pl
from jax.experimental.pallas import tpu as pltpu


def _round_up(x, m):
    return (x + m - 1) // m * m


def prepare_params(layer_weights, d_pad):
    """One-time prep: for each layer weight W [out, 2*in], build the fused
    projection weight [d_pad, 2*d_pad] = [ W_self^T | W_agg^T ] (zero-padded),
    cast to bf16, stack over layers."""
    w_cat = []
    for w in layer_weights:
        out_size, two_in = w.shape
        in_size = two_in // 2
        wc = jnp.zeros((d_pad, 2 * d_pad), jnp.float32)
        wc = wc.at[:in_size, :out_size].set(w[:, :in_size].T)               # self half
        wc = wc.at[:in_size, d_pad:d_pad + out_size].set(w[:, in_size:].T)  # agg half
        w_cat.append(wc)
    return jnp.stack(w_cat).astype(jnp.bfloat16)


def graphsage_forward(raw_features, mask_norm, w_cat, out_size):
    """GraphSage.forward (MEAN aggregator, gcn=False) over all subgraph nodes."""
    n, in_size = raw_features.shape
    num_layers, d_pad, _ = w_cat.shape
    n_pad = _round_up(n, 16)  # bf16 sublane granule; N=16 already aligned

    # Host-side zero padding (exact: tanh(0) == 0; padded mask rows/cols are 0).
    h0 = (jnp.zeros((n_pad, d_pad), jnp.float32)
          .at[:n, :in_size].set(raw_features)).astype(jnp.bfloat16)
    mask = (jnp.zeros((n_pad, n_pad), jnp.float32)
            .at[:n, :n].set(mask_norm)).astype(jnp.bfloat16)

    def kernel(mask_ref, h0_ref, w_ref, out_ref):
        m = mask_ref[...]                 # bf16 [n_pad, n_pad]
        h = h0_ref[...]                   # bf16 [n_pad, d_pad]
        for l in range(num_layers):       # static unroll (num_layers == 2)
            # Fused self+agg projection: one 256-wide bf16 MXU matmul, f32 acc.
            zc = jnp.dot(h, w_ref[l], preferred_element_type=jnp.float32)
            z_self = zc[:, :d_pad]                       # lane-aligned slice
            p = zc[:, d_pad:].astype(jnp.bfloat16)       # agg projection, bf16
            # Reassociated MEAN aggregation: mask_norm @ (H @ W_agg^T), bf16 MXU.
            agg = jnp.dot(m, p, preferred_element_type=jnp.float32)
            # f32 tanh (v5e-safe EUP path), then one bf16 rounding per layer.
            h = jnp.tanh(z_self + agg).astype(jnp.bfloat16)
        out_ref[...] = h

    out = pl.pallas_call(
        kernel,
        out_shape=jax.ShapeDtypeStruct((n_pad, d_pad), jnp.bfloat16),
        in_specs=[
            pl.BlockSpec(memory_space=pltpu.MemorySpace.VMEM),  # mask  [16,16]
            pl.BlockSpec(memory_space=pltpu.MemorySpace.VMEM),  # h0    [16,128]
            pl.BlockSpec(memory_space=pltpu.MemorySpace.VMEM),  # W_cat [L,128,256]
        ],
        out_specs=pl.BlockSpec(memory_space=pltpu.MemorySpace.VMEM),
    )(mask, h0, w_cat)

    return out[:n, :out_size].astype(jnp.float32)


def xavier_uniform(key, shape):
    fan_out, fan_in = shape
    a = (6.0 / (fan_in + fan_out)) ** 0.5
    return jax.random.uniform(key, shape, jnp.float32, -a, a)


if __name__ == "__main__":
    N = 16            # number of nodes in the subgraph (nodes_batch)
    input_size = 32   # raw feature dim
    out_size = 32     # embedding dim (== input_size so the row update is shape-consistent)
    num_layers = 2
    D_PAD = 128       # lane-dense feature padding

    key = jax.random.PRNGKey(0)
    k_feat, k_w = jax.random.split(key)

    # Raw node features for the chosen subgraph: raw_features[nodes_id[0]]
    raw_features = jax.random.normal(k_feat, (N, input_size), jnp.float32)

    # Deterministic synthetic adjacency (ring + skip-3 edges, symmetric),
    # plus self-loops (samp_neigh | {node}); MEAN-normalize rows.
    idx = jnp.arange(N)
    adj = jnp.zeros((N, N), jnp.float32)
    adj = adj.at[idx, (idx + 1) % N].set(1.0).at[(idx + 1) % N, idx].set(1.0)
    adj = adj.at[idx, (idx + 3) % N].set(1.0).at[(idx + 3) % N, idx].set(1.0)
    mask = adj.at[idx, idx].set(1.0)
    num_neigh = jnp.maximum(mask.sum(axis=1, keepdims=True), 1.0)
    mask_norm = mask / num_neigh

    # SageLayer weights: [out_size, n * layer_size] with n = 2 (non-BiLSTM).
    layer_weights = []
    for index in range(1, num_layers + 1):
        layer_size = out_size if index != 1 else input_size
        k_w, sub = jax.random.split(k_w)
        layer_weights.append(xavier_uniform(sub, (out_size, 2 * layer_size)))

    # One-time parameter prep (split/transpose/pad/concat/cast hoisted out).
    w_cat = prepare_params(layer_weights, D_PAD)

    out = graphsage_forward(raw_features, mask_norm, w_cat, out_size)
    out = jax.block_until_ready(out)
    assert out.shape == (N, out_size)

    # Pure-JAX f32 reference of the same forward (MEAN aggregator, gcn=False).
    h = raw_features
    for w in layer_weights:
        in_size_l = w.shape[1] // 2
        agg = mask_norm @ h
        h = jnp.tanh(h @ w[:, :in_size_l].T + agg @ w[:, in_size_l:].T)
    max_err = float(jnp.max(jnp.abs(out - h)))
    assert jnp.allclose(out, h, atol=5e-2, rtol=5e-2), max_err

    print("KERNEL_OK")
</pallas_src>

<mosaic_0001>
module attributes {stable_mosaic.version = 11 : i64} {
  func.func @kernel(%arg0: memref<16x16xbf16, #tpu.memory_space<vmem>>, %arg1: memref<16x128xbf16, #tpu.memory_space<vmem>>, %arg2: memref<2x128x256xbf16, #tpu.memory_space<vmem>>, %arg3: memref<16x128xbf16, #tpu.memory_space<vmem>>) attributes {dimension_semantics = [], scalar_prefetch = 0 : i64, scratch_operands = 0 : i64, tpu.core_type = #tpu.core_type<tc>} {
    %c0 = arith.constant 0 : index
    %c0_0 = arith.constant 0 : index
    %0 = vector.load %arg0[%c0, %c0_0] : memref<16x16xbf16, #tpu.memory_space<vmem>>, vector<16x16xbf16>
    %c0_1 = arith.constant 0 : index
    %c0_2 = arith.constant 0 : index
    %1 = vector.load %arg1[%c0_1, %c0_2] : memref<16x128xbf16, #tpu.memory_space<vmem>>, vector<16x128xbf16>
    %c0_3 = arith.constant 0 : index
    %c0_4 = arith.constant 0 : index
    %c0_5 = arith.constant 0 : index
    %2 = vector.load %arg2[%c0_3, %c0_4, %c0_5] : memref<2x128x256xbf16, #tpu.memory_space<vmem>>, vector<1x128x256xbf16>
    %3 = vector.shape_cast %2 : vector<1x128x256xbf16> to vector<128x256xbf16>
    %cst = arith.constant dense<0.000000e+00> : vector<16x256xf32>
    %4 = tpu.matmul %1, %3, %cst {dimension_numbers = #tpu.dot_dimension_numbers<[1], [0], [0], [1], [0, 0, 1, 1], [], []>} : vector<16x128xbf16>, vector<128x256xbf16>, vector<16x256xf32> -> vector<16x256xf32>
    %5 = vector.extract_strided_slice %4 {offsets = [0, 0], sizes = [16, 128], strides = [1, 1]} : vector<16x256xf32> to vector<16x128xf32>
    %6 = vector.extract_strided_slice %4 {offsets = [0, 128], sizes = [16, 128], strides = [1, 1]} : vector<16x256xf32> to vector<16x128xf32>
    %7 = arith.truncf %6 : vector<16x128xf32> to vector<16x128xbf16>
    %cst_6 = arith.constant dense<0.000000e+00> : vector<16x128xf32>
    %8 = tpu.matmul %0, %7, %cst_6 {dimension_numbers = #tpu.dot_dimension_numbers<[1], [0], [0], [1], [0, 0, 1, 1], [], []>} : vector<16x16xbf16>, vector<16x128xbf16>, vector<16x128xf32> -> vector<16x128xf32>
    %9 = arith.addf %5, %8 : vector<16x128xf32>
    %10 = math.tanh %9 : vector<16x128xf32>
    %11 = arith.truncf %10 : vector<16x128xf32> to vector<16x128xbf16>
    %c1 = arith.constant 1 : index
    %c0_7 = arith.constant 0 : index
    %c0_8 = arith.constant 0 : index
    %12 = vector.load %arg2[%c1, %c0_7, %c0_8] : memref<2x128x256xbf16, #tpu.memory_space<vmem>>, vector<1x128x256xbf16>
    %13 = vector.shape_cast %12 : vector<1x128x256xbf16> to vector<128x256xbf16>
    %cst_9 = arith.constant dense<0.000000e+00> : vector<16x256xf32>
    %14 = tpu.matmul %11, %13, %cst_9 {dimension_numbers = #tpu.dot_dimension_numbers<[1], [0], [0], [1], [0, 0, 1, 1], [], []>} : vector<16x128xbf16>, vector<128x256xbf16>, vector<16x256xf32> -> vector<16x256xf32>
    %15 = vector.extract_strided_slice %14 {offsets = [0, 0], sizes = [16, 128], strides = [1, 1]} : vector<16x256xf32> to vector<16x128xf32>
    %16 = vector.extract_strided_slice %14 {offsets = [0, 128], sizes = [16, 128], strides = [1, 1]} : vector<16x256xf32> to vector<16x128xf32>
    %17 = arith.truncf %16 : vector<16x128xf32> to vector<16x128xbf16>
    %cst_10 = arith.constant dense<0.000000e+00> : vector<16x128xf32>
    %18 = tpu.matmul %0, %17, %cst_10 {dimension_numbers = #tpu.dot_dimension_numbers<[1], [0], [0], [1], [0, 0, 1, 1], [], []>} : vector<16x16xbf16>, vector<16x128xbf16>, vector<16x128xf32> -> vector<16x128xf32>
    %19 = arith.addf %15, %18 : vector<16x128xf32>
    %20 = math.tanh %19 : vector<16x128xf32>
    %21 = arith.truncf %20 : vector<16x128xf32> to vector<16x128xbf16>
    %c0_11 = arith.constant 0 : index
    %c0_12 = arith.constant 0 : index
    %22 = vector.load %arg3[%c0_11, %c0_12] : memref<16x128xbf16, #tpu.memory_space<vmem>>, vector<16x128xbf16>
    tpu.vector_store %arg3[%c0_11, %c0_12], %21 {strides = array<i32>} : memref<16x128xbf16, #tpu.memory_space<vmem>>, vector<16x128xbf16>,
    return
  }
}

</mosaic_0001>

<llo_original>
// kernel: tpu_custom_call.1
$region0: #{tpu_custom_call.1}
  #allocation0 [shape = 'u32[]', space=smem, size = 0x4, offset = 0x4, fixed_abs, tag = 'smem constant byte address 0x4 - core index']
  #allocation1 [shape = 'u32[144,128]{1,0:T(1,128)}', space=vmem, size = 0x12000, scoped, tag = 'internal scratch']
  %s0 = inlined_call_operand.hbm [shape: bf16[16,16], index: 0, kind: input, shape index: {}]
  %s1 = inlined_call_operand.hbm [shape: bf16[16,128], index: 1, kind: input, shape index: {}]
  %s2 = inlined_call_operand.hbm [shape: bf16[2,128,256], index: 2, kind: input, shape index: {}]
  %s3 = inlined_call_operand.hbm [shape: bf16[16,128], index: 3, kind: output, shape index: {}]
  %s4 = sld [smem:[#allocation0]]
  $region34: #{tpu_custom_call.1} parent=0
    _
  %s6 = ssub.s32 1, %s4
  %s7 = scalar_select 0, %s6, %s4
  $region1: #{tpu_custom_call.1} parent=0
    #allocation2 [shape = 'u8[4096]{0}', space=vmem, size = 0x1000, scoped, tag = 'input window, operand 0, single buffered']
    #allocation3 [shape = 's32[1]{0}', space=sflag, size = 0x4, scoped, tag = 'scoped memory for tpu_custom_call.1']
    #allocation4 [shape = 's32[1]{0}', space=sflag, size = 0x4, scoped, tag = 'scoped memory for tpu_custom_call.1']
    #allocation5 [shape = 'u8[4096]{0}', space=vmem, size = 0x1000, scoped, tag = 'input window, operand 1, single buffered']
    #allocation6 [shape = 's32[1]{0}', space=sflag, size = 0x4, scoped, tag = 'scoped memory for tpu_custom_call.1']
    #allocation7 [shape = 'u8[131072]{0}', space=vmem, size = 0x20000, scoped, tag = 'input window, operand 2, single buffered']
    #allocation8 [shape = 'u8[4096]{0}', space=vmem, size = 0x1000, scoped, tag = 'output window, operand 0, single buffered']
    %8 = vsyncpa [#allocation3], 0
    %9 = vsyncpa [#allocation6], 0
    %10 = vsyncpa [#allocation4], 0
    // Predicated region
    $region2: #{tpu_custom_call.1} parent=1 // pred_check
      _
    $region3: #{tpu_custom_call.1} parent=1 // pred_check_branch
      %12 = sbr.rel (0) target = $region5
    $region4: #{tpu_custom_call.1} parent=1 // pred_region
      %s14 = ssub.s32 128, 128
      %15 = vsyncadd [#allocation3], %s14
      %s16 = sshll.u32 [#allocation2], 4
      %s17 = int_to_ptr.vmem [resolvable:$true] %s16
      %22 = dma.hbm_to_vmem [thread:$0]  %s0, 128, %s17, [#allocation3], 64, 64, 4
    $region5: #{tpu_custom_call.1} parent=1 // pred_fallthru
      _
    // Predicated region
    $region6: #{tpu_custom_call.1} parent=1 // pred_check
      _
    $region7: #{tpu_custom_call.1} parent=1 // pred_check_branch
      %24 = sbr.rel (0) target = $region9
    $region8: #{tpu_custom_call.1} parent=1 // pred_region
      %s26 = ssub.s32 128, 128
      %27 = vsyncadd [#allocation6], %s26
      %s28 = sshll.u32 [#allocation5], 4
      %s29 = int_to_ptr.vmem [resolvable:$true] %s28
      %34 = dma.hbm_to_vmem [thread:$0]  %s1, 128, %s29, [#allocation6], 64, 64, 4
    $region9: #{tpu_custom_call.1} parent=1 // pred_fallthru
      _
    // Predicated region
    $region10: #{tpu_custom_call.1} parent=1 // pred_check
      _
    $region11: #{tpu_custom_call.1} parent=1 // pred_check_branch
      %36 = sbr.rel (0) target = $region13
    $region12: #{tpu_custom_call.1} parent=1 // pred_region
      %s38 = ssub.s32 4096, 4096
      %39 = vsyncadd [#allocation6], %s38
      %s40 = sshll.u32 [#allocation7], 4
      %s41 = int_to_ptr.vmem [resolvable:$true] %s40
      %46 = dma.hbm_to_vmem [thread:$0]  %s2, 4096, %s41, [#allocation6], 128, 128, 8
    $region13: #{tpu_custom_call.1} parent=1 // pred_fallthru
      _
    // Predicated region
    $region14: #{tpu_custom_call.1} parent=1 // pred_check
      _
    $region15: #{tpu_custom_call.1} parent=1 // pred_check_branch
      %48 = sbr.rel (0) target = $region17
    $region16: #{tpu_custom_call.1} parent=1 // pred_region
      %49 = dma.done [#allocation3], 128
    $region17: #{tpu_custom_call.1} parent=1 // pred_fallthru
      _
    // Predicated region
    $region18: #{tpu_custom_call.1} parent=1 // pred_check
      _
    $region19: #{tpu_custom_call.1} parent=1 // pred_check_branch
      %51 = sbr.rel (0) target = $region21
    $region20: #{tpu_custom_call.1} parent=1 // pred_region
      %52 = dma.done [#allocation6], 128
    $region21: #{tpu_custom_call.1} parent=1 // pred_fallthru
      _
    // Predicated region
    $region22: #{tpu_custom_call.1} parent=1 // pred_check
      _
    $region23: #{tpu_custom_call.1} parent=1 // pred_check_branch
      %54 = sbr.rel (0) target = $region25
    $region24: #{tpu_custom_call.1} parent=1 // pred_region
      %55 = dma.done [#allocation6], 4096
    $region25: #{tpu_custom_call.1} parent=1 // pred_fallthru
      _
    %v57 = vld [vmem:[#allocation2] sm:$0xf]
    %v58 = vld [vmem:[#allocation2 + $0x4] sm:$0xf]
    %v59 = vld [vmem:[#allocation5] sm:$0xf]
    %v60 = vld [vmem:[#allocation5 + $0x4] sm:$0xf]
    %v61 = vld [vmem:[#allocation7] sm:$0xff]
    %v62 = vld [vmem:[#allocation7 + $0x8] sm:$0xff]
    %v63 = vld [vmem:[#allocation7 + $0x10] sm:$0xff]
    %v64 = vld [vmem:[#allocation7 + $0x18] sm:$0xff]
    %v65 = vld [vmem:[#allocation7 + $0x20] sm:$0xff]
    %v66 = vld [vmem:[#allocation7 + $0x28] sm:$0xff]
    %v67 = vld [vmem:[#allocation7 + $0x30] sm:$0xff]
    %v68 = vld [vmem:[#allocation7 + $0x38] sm:$0xff]
    %v69 = vld [vmem:[#allocation7 + $0x40] sm:$0xff]
    %v70 = vld [vmem:[#allocation7 + $0x48] sm:$0xff]
    %v71 = vld [vmem:[#allocation7 + $0x50] sm:$0xff]
    %v72 = vld [vmem:[#allocation7 + $0x58] sm:$0xff]
    %v73 = vld [vmem:[#allocation7 + $0x60] sm:$0xff]
    %v74 = vld [vmem:[#allocation7 + $0x68] sm:$0xff]
    %v75 = vld [vmem:[#allocation7 + $0x70] sm:$0xff]
    %v76 = vld [vmem:[#allocation7 + $0x78] sm:$0xff]
    %v79 = vunpack.c.l.b16 %v59
    %v80 = vunpack.c.l.b16 %v60
    %v81 = vpack.c.b16 %v80, %v79
    %v99 = vunpack.c.l.b16 %v61
    %v100 = vunpack.c.h.b16 %v61
    %v101 = vunpack.c.l.b16 %v62
    %v102 = vunpack.c.h.b16 %v62
    %v103 = vunpack.c.l.b16 %v63
    %v104 = vunpack.c.h.b16 %v63
    %v105 = vunpack.c.l.b16 %v64
    %v106 = vunpack.c.h.b16 %v64
    %v107 = vunpack.c.l.b16 %v65
    %v108 = vunpack.c.h.b16 %v65
    %v109 = vunpack.c.l.b16 %v66
    %v110 = vunpack.c.h.b16 %v66
    %v111 = vunpack.c.l.b16 %v67
    %v112 = vunpack.c.h.b16 %v67
    %v113 = vunpack.c.l.b16 %v68
    %v114 = vunpack.c.h.b16 %v68
    %v115 = vunpack.c.l.b16 %v69
    %v116 = vunpack.c.h.b16 %v69
    %v117 = vunpack.c.l.b16 %v70
    %v118 = vunpack.c.h.b16 %v70
    %v119 = vunpack.c.l.b16 %v71
    %v120 = vunpack.c.h.b16 %v71
    %v121 = vunpack.c.l.b16 %v72
    %v122 = vunpack.c.h.b16 %v72
    %v123 = vunpack.c.l.b16 %v73
    %v124 = vunpack.c.h.b16 %v73
    %v125 = vunpack.c.l.b16 %v74
    %v126 = vunpack.c.h.b16 %v74
    %v127 = vunpack.c.l.b16 %v75
    %v128 = vunpack.c.h.b16 %v75
    %v129 = vunpack.c.l.b16 %v76
    %v130 = vunpack.c.h.b16 %v76
    %v131 = vpack.c.b16 %v101, %v99
    %v132 = vpack.c.b16 %v102, %v100
    %v133 = vpack.c.b16 %v105, %v103
    %v134 = vpack.c.b16 %v106, %v104
    %v135 = vpack.c.b16 %v109, %v107
    %v136 = vpack.c.b16 %v110, %v108
    %v137 = vpack.c.b16 %v113, %v111
    %v138 = vpack.c.b16 %v114, %v112
    %v139 = vpack.c.b16 %v117, %v115
    %v140 = vpack.c.b16 %v118, %v116
    %v141 = vpack.c.b16 %v121, %v119
    %v142 = vpack.c.b16 %v122, %v120
    %v143 = vpack.c.b16 %v125, %v123
    %v144 = vpack.c.b16 %v126, %v124
    %v145 = vpack.c.b16 %v129, %v127
    %v146 = vpack.c.b16 %v130, %v128
    %163 = vmatprep.subr.bf16.mxu0 %v146
    %164 = vmatpush1.bf16.msra.mxu0 %v145
    %165 = vmatprep.subr.bf16.mxu0 %v144
    %166 = vmatpush1.bf16.msra.mxu0 %v143
    %167 = vmatprep.subr.bf16.mxu0 %v142
    %168 = vmatpush1.bf16.msra.mxu0 %v141
    %169 = vmatprep.subr.bf16.mxu0 %v140
    %170 = vmatpush1.bf16.msra.mxu0 %v139
    %171 = vmatprep.subr.bf16.mxu0 %v138
    %172 = vmatpush1.bf16.msra.mxu0 %v137
    %173 = vmatprep.subr.bf16.mxu0 %v136
    %174 = vmatpush1.bf16.msra.mxu0 %v135
    %175 = vmatprep.subr.bf16.mxu0 %v134
    %176 = vmatpush1.bf16.msra.mxu0 %v133
    %177 = vmatprep.subr.bf16.mxu0 %v132
    %178 = vmatpush1.bf16.msra.mxu0 %v131
    %179 = vmatprep.subr.bf16.mxu0 0
    %180 = vmatpush2.bf16.msra.mxu0 0
    %181 = vmatprep.subr.bf16.mxu0 0
    %182 = vmatpush2.bf16.msra.mxu0 0
    %183 = vmatprep.subr.bf16.mxu0 0
    %184 = vmatpush2.bf16.msra.mxu0 0
    %185 = vmatprep.subr.bf16.mxu0 0
    %186 = vmatpush2.bf16.msra.mxu0 0
    %187 = vmatprep.subr.bf16.mxu0 0
    %188 = vmatpush2.bf16.msra.mxu0 0
    %189 = vmatprep.subr.bf16.mxu0 0
    %190 = vmatpush2.bf16.msra.mxu0 0
    %191 = vmatprep.subr.bf16.mxu0 0
    %192 = vmatpush2.bf16.msra.mxu0 0
    %193 = vmatprep.subr.bf16.mxu0 0
    %194 = vmatpush2.bf16.msra.mxu0 0
    %195 = vmatprep.mubr.bf16.mxu0 0
    %196 = vmatmul.mubr.bf16.gmra.mxu0 %v81
    %v197 = vpop.f32.mrf.mxu0
    %v198 = vadd.f32 0.0, %v197
    %v199 = vpop.f32.mrf.mxu0
    %v200 = vadd.f32 0.0, %v199
    %v201 = vpop.f32.mrf.mxu0
    %v202 = vadd.f32 0.0, %v201
    %v203 = vpop.f32.mrf.mxu0
    %v204 = vadd.f32 0.0, %v203
    %205 = vdwg.mxu0
    %v206 = vpack.c.bf16 %v204, %v200
    %v209 = vunpack.c.l.b16 %v57
    %v210 = vunpack.c.l.b16 %v58
    %v211 = vpack.c.b16 %v210, %v209
    %vm212 = vcmask 130048
    %v214 = vsel %vm212, %v211, 0
    %216 = vmatprep.subr.bf16.mxu0 0
    %217 = vmatpush1.bf16.msra.mxu0 0
    %218 = vmatprep.subr.bf16.mxu0 0
    %219 = vmatpush1.bf16.msra.mxu0 0
    %220 = vmatprep.subr.bf16.mxu0 0
    %221 = vmatpush1.bf16.msra.mxu0 0
    %222 = vmatprep.subr.bf16.mxu0 0
    %223 = vmatpush1.bf16.msra.mxu0 0
    %224 = vmatprep.subr.bf16.mxu0 0
    %225 = vmatpush1.bf16.msra.mxu0 0
    %226 = vmatprep.subr.bf16.mxu0 0
    %227 = vmatpush1.bf16.msra.mxu0 0
    %228 = vmatprep.subr.bf16.mxu0 0
    %229 = vmatpush1.bf16.msra.mxu0 0
    %230 = vmatprep.subr.bf16.mxu0 0
    %231 = vmatpush1.bf16.msra.mxu0 %v206
    %232 = vmatprep.subr.bf16.mxu0 0
    %233 = vmatpush2.bf16.msra.mxu0 0
    %234 = vmatprep.subr.bf16.mxu0 0
    %235 = vmatpush2.bf16.msra.mxu0 0
    %236 = vmatprep.subr.bf16.mxu0 0
    %237 = vmatpush2.bf16.msra.mxu0 0
    %238 = vmatprep.subr.bf16.mxu0 0
    %239 = vmatpush2.bf16.msra.mxu0 0
    %240 = vmatprep.subr.bf16.mxu0 0
    %241 = vmatpush2.bf16.msra.mxu0 0
    %242 = vmatprep.subr.bf16.mxu0 0
    %243 = vmatpush2.bf16.msra.mxu0 0
    %244 = vmatprep.subr.bf16.mxu0 0
    %245 = vmatpush2.bf16.msra.mxu0 0
    %246 = vmatprep.subr.bf16.mxu0 0
    %247 = vmatpush2.bf16.msra.mxu0 0
    %248 = vmatprep.mubr.bf16.mxu0 0
    %249 = vmatmul.mubr.bf16.gmra.mxu0 %v214
    %v250 = vpop.f32.mrf.mxu0
    %v251 = vadd.f32 0.0, %v250
    %v252 = vpop.f32.mrf.mxu0
    %v253 = vpop.f32.mrf.mxu0
    %v254 = vadd.f32 0.0, %v253
    %v255 = vpop.f32.mrf.mxu0
    %256 = vdwg.mxu0
    %v257 = vadd.f32 %v198, %v251
    %v258 = vadd.f32 %v202, %v254
    %v259 = vtanh.pop %v257
    %v260 = vtanh.pop %v258
    %v261 = vpack.c.bf16 %v260, %v259
    %s262 = scalar_lea.vmem [#allocation7], 128
    %v263 = vld [vmem:[%s262] sm:$0xff]
    %v264 = vld [vmem:[%s262 + $0x8] sm:$0xff]
    %v265 = vld [vmem:[%s262 + $0x10] sm:$0xff]
    %v266 = vld [vmem:[%s262 + $0x18] sm:$0xff]
    %v267 = vld [vmem:[%s262 + $0x20] sm:$0xff]
    %v268 = vld [vmem:[%s262 + $0x28] sm:$0xff]
    %v269 = vld [vmem:[%s262 + $0x30] sm:$0xff]
    %v270 = vld [vmem:[%s262 + $0x38] sm:$0xff]
    %v271 = vld [vmem:[%s262 + $0x40] sm:$0xff]
    %v272 = vld [vmem:[%s262 + $0x48] sm:$0xff]
    %v273 = vld [vmem:[%s262 + $0x50] sm:$0xff]
    %v274 = vld [vmem:[%s262 + $0x58] sm:$0xff]
    %v275 = vld [vmem:[%s262 + $0x60] sm:$0xff]
    %v276 = vld [vmem:[%s262 + $0x68] sm:$0xff]
    %v277 = vld [vmem:[%s262 + $0x70] sm:$0xff]
    %v278 = vld [vmem:[%s262 + $0x78] sm:$0xff]
    %v295 = vunpack.c.l.b16 %v263
    %v296 = vunpack.c.h.b16 %v263
    %v297 = vunpack.c.l.b16 %v264
    %v298 = vunpack.c.h.b16 %v264
    %v299 = vunpack.c.l.b16 %v265
    %v300 = vunpack.c.h.b16 %v265
    %v301 = vunpack.c.l.b16 %v266
    %v302 = vunpack.c.h.b16 %v266
    %v303 = vunpack.c.l.b16 %v267
    %v304 = vunpack.c.h.b16 %v267
    %v305 = vunpack.c.l.b16 %v268
    %v306 = vunpack.c.h.b16 %v268
    %v307 = vunpack.c.l.b16 %v269
    %v308 = vunpack.c.h.b16 %v269
    %v309 = vunpack.c.l.b16 %v270
    %v310 = vunpack.c.h.b16 %v270
    %v311 = vunpack.c.l.b16 %v271
    %v312 = vunpack.c.h.b16 %v271
    %v313 = vunpack.c.l.b16 %v272
    %v314 = vunpack.c.h.b16 %v272
    %v315 = vunpack.c.l.b16 %v273
    %v316 = vunpack.c.h.b16 %v273
    %v317 = vunpack.c.l.b16 %v274
    %v318 = vunpack.c.h.b16 %v274
    %v319 = vunpack.c.l.b16 %v275
    %v320 = vunpack.c.h.b16 %v275
    %v321 = vunpack.c.l.b16 %v276
    %v322 = vunpack.c.h.b16 %v276
    %v323 = vunpack.c.l.b16 %v277
    %v324 = vunpack.c.h.b16 %v277
    %v325 = vunpack.c.l.b16 %v278
    %v326 = vunpack.c.h.b16 %v278
    %v327 = vpack.c.b16 %v297, %v295
    %v328 = vpack.c.b16 %v298, %v296
    %v329 = vpack.c.b16 %v301, %v299
    %v330 = vpack.c.b16 %v302, %v300
    %v331 = vpack.c.b16 %v305, %v303
    %v332 = vpack.c.b16 %v306, %v304
    %v333 = vpack.c.b16 %v309, %v307
    %v334 = vpack.c.b16 %v310, %v308
    %v335 = vpack.c.b16 %v313, %v311
    %v336 = vpack.c.b16 %v314, %v312
    %v337 = vpack.c.b16 %v317, %v315
    %v338 = vpack.c.b16 %v318, %v316
    %v339 = vpack.c.b16 %v321, %v319
    %v340 = vpack.c.b16 %v322, %v320
    %v341 = vpack.c.b16 %v325, %v323
    %v342 = vpack.c.b16 %v326, %v324
    %359 = vmatprep.subr.bf16.mxu0 %v342
    %360 = vmatpush1.bf16.msra.mxu0 %v341
    %361 = vmatprep.subr.bf16.mxu0 %v340
    %362 = vmatpush1.bf16.msra.mxu0 %v339
    %363 = vmatprep.subr.bf16.mxu0 %v338
    %364 = vmatpush1.bf16.msra.mxu0 %v337
    %365 = vmatprep.subr.bf16.mxu0 %v336
    %366 = vmatpush1.bf16.msra.mxu0 %v335
    %367 = vmatprep.subr.bf16.mxu0 %v334
    %368 = vmatpush1.bf16.msra.mxu0 %v333
    %369 = vmatprep.subr.bf16.mxu0 %v332
    %370 = vmatpush1.bf16.msra.mxu0 %v331
    %371 = vmatprep.subr.bf16.mxu0 %v330
    %372 = vmatpush1.bf16.msra.mxu0 %v329
    %373 = vmatprep.subr.bf16.mxu0 %v328
    %374 = vmatpush1.bf16.msra.mxu0 %v327
    %375 = vmatprep.subr.bf16.mxu0 0
    %376 = vmatpush2.bf16.msra.mxu0 0
    %377 = vmatprep.subr.bf16.mxu0 0
    %378 = vmatpush2.bf16.msra.mxu0 0
    %379 = vmatprep.subr.bf16.mxu0 0
    %380 = vmatpush2.bf16.msra.mxu0 0
    %381 = vmatprep.subr.bf16.mxu0 0
    %382 = vmatpush2.bf16.msra.mxu0 0
    %383 = vmatprep.subr.bf16.mxu0 0
    %384 = vmatpush2.bf16.msra.mxu0 0
    %385 = vmatprep.subr.bf16.mxu0 0
    %386 = vmatpush2.bf16.msra.mxu0 0
    %387 = vmatprep.subr.bf16.mxu0 0
    %388 = vmatpush2.bf16.msra.mxu0 0
    %389 = vmatprep.subr.bf16.mxu0 0
    %390 = vmatpush2.bf16.msra.mxu0 0
    %391 = vmatprep.mubr.bf16.mxu0 0
    %392 = vmatmul.mubr.bf16.gmra.mxu0 %v261
    %v393 = vpop.f32.mrf.mxu0
    %v394 = vadd.f32 0.0, %v393
    %v395 = vpop.f32.mrf.mxu0
    %v396 = vadd.f32 0.0, %v395
    %v397 = vpop.f32.mrf.mxu0
    %v398 = vadd.f32 0.0, %v397
    %v399 = vpop.f32.mrf.mxu0
    %v400 = vadd.f32 0.0, %v399
    %401 = vdwg.mxu0
    %v402 = vpack.c.bf16 %v400, %v396
    %403 = vmatprep.subr.bf16.mxu0 0
    %404 = vmatpush1.bf16.msra.mxu0 0
    %405 = vmatprep.subr.bf16.mxu0 0
    %406 = vmatpush1.bf16.msra.mxu0 0
    %407 = vmatprep.subr.bf16.mxu0 0
    %408 = vmatpush1.bf16.msra.mxu0 0
    %409 = vmatprep.subr.bf16.mxu0 0
    %410 = vmatpush1.bf16.msra.mxu0 0
    %411 = vmatprep.subr.bf16.mxu0 0
    %412 = vmatpush1.bf16.msra.mxu0 0
    %413 = vmatprep.subr.bf16.mxu0 0
    %414 = vmatpush1.bf16.msra.mxu0 0
    %415 = vmatprep.subr.bf16.mxu0 0
    %416 = vmatpush1.bf16.msra.mxu0 0
    %417 = vmatprep.subr.bf16.mxu0 0
    %418 = vmatpush1.bf16.msra.mxu0 %v402
    %419 = vmatprep.subr.bf16.mxu0 0
    %420 = vmatpush2.bf16.msra.mxu0 0
    %421 = vmatprep.subr.bf16.mxu0 0
    %422 = vmatpush2.bf16.msra.mxu0 0
    %423 = vmatprep.subr.bf16.mxu0 0
    %424 = vmatpush2.bf16.msra.mxu0 0
    %425 = vmatprep.subr.bf16.mxu0 0
    %426 = vmatpush2.bf16.msra.mxu0 0
    %427 = vmatprep.subr.bf16.mxu0 0
    %428 = vmatpush2.bf16.msra.mxu0 0
    %429 = vmatprep.subr.bf16.mxu0 0
    %430 = vmatpush2.bf16.msra.mxu0 0
    %431 = vmatprep.subr.bf16.mxu0 0
    %432 = vmatpush2.bf16.msra.mxu0 0
    %433 = vmatprep.subr.bf16.mxu0 0
    %434 = vmatpush2.bf16.msra.mxu0 0
    %435 = vmatprep.mubr.bf16.mxu0 0
    %436 = vmatmul.mubr.bf16.gmra.mxu0 %v214
    %v437 = vpop.f32.mrf.mxu0
    %v438 = vadd.f32 0.0, %v437
    %v439 = vpop.f32.mrf.mxu0
    %v440 = vpop.f32.mrf.mxu0
    %v441 = vadd.f32 0.0, %v440
    %v442 = vpop.f32.mrf.mxu0
    %443 = vdwg.mxu0
    %v444 = vadd.f32 %v394, %v438
    %v445 = vadd.f32 %v398, %v441
    %v446 = vtanh.pop %v444
    %v447 = vtanh.pop %v445
    %v448 = vpack.c.bf16 %v447, %v446
    %v450 = vunpack.c.l.b16 %v448
    %v451 = vunpack.c.h.b16 %v448
    %v452 = vpack.c.b16 %v450, %v450
    %v453 = vpack.c.b16 %v451, %v451
    %456 = vst [vmem:[#allocation8] sm:$0xf] %v452
    %457 = vst [vmem:[#allocation8 + $0x4] sm:$0xf] %v453
    // Predicated region
    $region26: #{tpu_custom_call.1} parent=1 // pred_check
      _
    $region27: #{tpu_custom_call.1} parent=1 // pred_check_branch
      %459 = sbr.rel (0) target = $region29
    $region28: #{tpu_custom_call.1} parent=1 // pred_region
      %s461 = ssub.s32 128, 128
      %462 = vsyncadd [#allocation4], %s461
      %s463 = sshll.u32 [#allocation8], 4
      %s464 = int_to_ptr.vmem [resolvable:$true] %s463
      %469 = dma.vmem_to_hbm [thread:$0]  %s464, 128, %s3, [#allocation4], 64, 64, 4
    $region29: #{tpu_custom_call.1} parent=1 // pred_fallthru
      _
    // Predicated region
    $region30: #{tpu_custom_call.1} parent=1 // pred_check
      _
    $region31: #{tpu_custom_call.1} parent=1 // pred_check_branch
      %471 = sbr.rel (0) target = $region33
    $region32: #{tpu_custom_call.1} parent=1 // pred_region
      %472 = dma.done [#allocation4], 128
    $region33: #{tpu_custom_call.1} parent=1 // pred_fallthru
      _
    %473 = vsyncpa [#allocation3], 1
    %474 = vsyncpa [#allocation6], 1
    %475 = vsyncpa [#allocation4], 1

</llo_original>
